<compile_context>
chip_gen: v7x
topology: tpu7x:2x2x1
jax: 0.10.0
libtpu: 0.0.40
codegen_flags: <defaults>
</compile_context>

<pallas_src>
import functools

import jax
import jax.numpy as jnp
from jax import lax
from jax.experimental import pallas as pl
from jax.experimental.pallas import tpu as pltpu


def _round_up(x, m):
    return (x + m - 1) // m * m


def _gather_table_rows(idx_sm, base, n_rows, n_table_rows, table_hbm, dst, sem):
    """DMA-gather n_rows table rows (ids from SMEM) into the VMEM scratch `dst`.

    All copies share one DMA semaphore; every copy is waited before the caller
    reads `dst`, so total signalled == total waited and all bytes have landed.
    """
    unroll = min(n_rows, 8)

    def issue(r, carry):
        tok = idx_sm[base + r]
        # Clamp: an out-of-range token id must not become an OOB DMA.
        tok = jnp.minimum(jnp.maximum(tok, 0), n_table_rows - 1)
        pltpu.make_async_copy(
            table_hbm.at[pl.ds(tok, 1), :],
            dst.at[pl.ds(r, 1), :],
            sem,
        ).start()
        return carry

    def wait(r, carry):
        # Only shape + semaphore matter for the wait descriptor.
        pltpu.make_async_copy(
            table_hbm.at[pl.ds(0, 1), :],
            dst.at[pl.ds(r, 1), :],
            sem,
        ).wait()
        return carry

    lax.fori_loop(0, n_rows, issue, 0, unroll=unroll)
    lax.fori_loop(0, n_rows, wait, 0, unroll=unroll)


def _bigram_logits_kernel(idx_sm, table_hbm, logits_ref, rows_vmem, sem, *, v_true):
    tn = logits_ref.shape[0]
    base = pl.program_id(0) * tn
    _gather_table_rows(idx_sm, base, tn, v_true, table_hbm, rows_vmem, sem)
    logits_ref[...] = rows_vmem[...]


def _bigram_logits_loss_kernel(idx_sm, tgt_ref, table_hbm, logits_ref, nll_ref,
                               rows_vmem, sem, *, v_true):
    tn, v_pad = logits_ref.shape
    base = pl.program_id(0) * tn
    _gather_table_rows(idx_sm, base, tn, v_true, table_hbm, rows_vmem, sem)

    logits = rows_vmem[...]
    logits_ref[...] = logits

    # Per-row NLL = logsumexp(logits[:v_true]) - logits[target]; pad rows carry
    # target == -1 and contribute 0.
    col = lax.broadcasted_iota(jnp.int32, (tn, v_pad), 1)
    if v_pad == v_true:
        masked = logits
    else:
        masked = jnp.where(col < v_true, logits, jnp.float32(-1e30))
    m = jnp.max(masked, axis=-1, keepdims=True)
    lse = m + jnp.log(jnp.sum(jnp.exp(masked - m), axis=-1, keepdims=True))
    picked = jnp.sum(jnp.where(col == tgt_ref[...], logits, 0.0),
                     axis=-1, keepdims=True)
    row_ok = (tgt_ref[...] >= 0).astype(jnp.float32)
    nll_ref[...] = (lse - picked) * row_ok


def bigram_forward(idx, table, target=None, *, tile_n=512):
    """Mirrors BigramLanguageModel.forward.

    idx:    (B, S) int32 token ids
    table:  (V, V) float32 embedding (lookup) table
    target: optional (B, S) int32 token ids
    Returns (logits, loss):
      - target is None: logits (B, S, V), loss None
      - else:           logits (B*S, V),  loss scalar (mean cross-entropy)
    """
    B, S = idx.shape
    V = table.shape[0]
    N = B * S

    # Lane-dense logits: pad the vocab (column) axis to a multiple of 128.
    # Table rows need no padding -- the gather only ever reads rows [0, V).
    vc_pad = _round_up(V, 128)
    table_p = table.astype(jnp.float32)
    if vc_pad != V:
        table_p = jnp.pad(table_p, ((0, 0), (0, vc_pad - V)))

    # Tile the flattened token axis (multiple of 8 sublanes).  Ensure >= 2 grid
    # steps whenever possible so the "parallel" axis can split across the two
    # TensorCores of a v7x megacore.
    tn = min(tile_n, _round_up(N, 8))
    if N >= 16:
        tn = min(tn, _round_up((N + 1) // 2, 8))

    # Per-generation VMEM budget: 0.75x of per-TensorCore capacity (leaves
    # headroom for Mosaic internal scratch); falls back to the smallest (v7x).
    try:
        vmem_cap = int(pltpu.get_tpu_info().vmem_capacity_bytes)
    except Exception:  # pragma: no cover - conservative fallback
        vmem_cap = 64 * 2**20
    budget = (vmem_cap * 3) // 4

    def _need(t):
        return (t * vc_pad * 4            # gather scratch
                + 2 * t * vc_pad * 4      # logits output tile, double-buffered
                + 4 * t * 4               # target + nll tiles, double-buffered
                + (2 << 20))              # misc headroom
    while tn > 8 and _need(tn) > budget:
        tn = _round_up(max(tn // 2, 8), 8)

    n_pad = _round_up(N, tn)
    num_tiles = n_pad // tn
    vmem_limit = int(min(budget, max(2 * _need(tn), 16 * 2**20)))

    cparams = pltpu.CompilerParams(
        dimension_semantics=("parallel",),
        vmem_limit_bytes=vmem_limit,
    )

    idx_flat = jnp.zeros((n_pad,), jnp.int32).at[:N].set(
        idx.reshape(-1).astype(jnp.int32))

    table_spec = pl.BlockSpec(memory_space=pl.ANY)                   # stays in HBM
    logits_spec = pl.BlockSpec((tn, vc_pad), lambda i, idx_sm: (i, 0))
    scratch = [pltpu.VMEM((tn, vc_pad), jnp.float32),
               pltpu.SemaphoreType.DMA]

    if target is None:
        cost = pl.CostEstimate(
            flops=n_pad * vc_pad,
            transcendentals=0,
            bytes_accessed=2 * n_pad * vc_pad * 4 + n_pad * 4,
        )
        logits = pl.pallas_call(
            functools.partial(_bigram_logits_kernel, v_true=V),
            out_shape=jax.ShapeDtypeStruct((n_pad, vc_pad), jnp.float32),
            grid_spec=pltpu.PrefetchScalarGridSpec(
                num_scalar_prefetch=1,
                grid=(num_tiles,),
                in_specs=[table_spec],
                out_specs=logits_spec,
                scratch_shapes=scratch),
            compiler_params=cparams,
            cost_estimate=cost,
        )(idx_flat, table_p)
        return logits[:N, :V].reshape(B, S, V), None

    tgt_flat = jnp.full((n_pad, 1), -1, jnp.int32).at[:N, 0].set(
        target.reshape(-1).astype(jnp.int32))
    tgt_spec = pl.BlockSpec((tn, 1), lambda i, idx_sm: (i, 0))
    nll_spec = pl.BlockSpec((tn, 1), lambda i, idx_sm: (i, 0))

    cost = pl.CostEstimate(
        flops=6 * n_pad * vc_pad,
        transcendentals=n_pad * vc_pad + n_pad,
        bytes_accessed=2 * n_pad * vc_pad * 4 + 3 * n_pad * 4,
    )
    logits, nll = pl.pallas_call(
        functools.partial(_bigram_logits_loss_kernel, v_true=V),
        out_shape=(
            jax.ShapeDtypeStruct((n_pad, vc_pad), jnp.float32),
            jax.ShapeDtypeStruct((n_pad, 1), jnp.float32),
        ),
        grid_spec=pltpu.PrefetchScalarGridSpec(
            num_scalar_prefetch=1,
            grid=(num_tiles,),
            in_specs=[tgt_spec, table_spec],
            out_specs=[logits_spec, nll_spec],
            scratch_shapes=scratch),
        compiler_params=cparams,
        cost_estimate=cost,
    )(idx_flat, tgt_flat, table_p)

    loss = jnp.sum(nll) / jnp.float32(N)
    return logits[:N, :V], loss


if __name__ == "__main__":
    B, S, V = 2, 8, 128

    key = jax.random.PRNGKey(0)
    k_tab, k_idx, k_tgt = jax.random.split(key, 3)
    # Deterministic "nn.Embedding(vocab_size, vocab_size)" weight.
    table = jax.random.normal(k_tab, (V, V), dtype=jnp.float32)
    idx = jax.random.randint(k_idx, (B, S), 0, V, dtype=jnp.int32)
    tgt = jax.random.randint(k_tgt, (B, S), 0, V, dtype=jnp.int32)

    # Path with target (logits + cross-entropy loss).
    logits, loss = bigram_forward(idx, table, tgt)
    logits = jax.block_until_ready(logits)
    loss = jax.block_until_ready(loss)

    # Path without target (logits only), like generate()'s inner call.
    logits_nt, loss_nt = bigram_forward(idx, table, None)
    jax.block_until_ready(logits_nt)
    assert loss_nt is None
    assert logits_nt.shape == (B, S, V)

    # Reference check in plain JAX.
    ref_logits = table[idx.reshape(-1)]                              # (B*S, V)
    ref_lse = jax.nn.logsumexp(ref_logits, axis=-1)
    ref_nll = ref_lse - ref_logits[jnp.arange(B * S), tgt.reshape(-1)]
    ref_loss = jnp.mean(ref_nll)
    assert jnp.allclose(logits, ref_logits, atol=1e-5, rtol=1e-5)
    assert jnp.allclose(loss, ref_loss, atol=1e-5, rtol=1e-5)
    assert jnp.allclose(logits_nt.reshape(B * S, V), ref_logits, atol=1e-5, rtol=1e-5)

    print("KERNEL_OK")
</pallas_src>

<mosaic_0001>
module attributes {stable_mosaic.version = 11 : i64} {
  func.func @_bigram_logits_loss_kernel(%arg0: i32, %arg1: memref<16xi32, #tpu.memory_space<smem>>, %arg2: memref<8x1xi32, #tpu.memory_space<vmem>>, %arg3: memref<128x128xf32, #tpu.memory_space<any>>, %arg4: memref<8x128xf32, #tpu.memory_space<vmem>>, %arg5: memref<8x1xf32, #tpu.memory_space<vmem>>, %arg6: memref<8x128xf32, #tpu.memory_space<vmem>>, %arg7: memref<!tpu.dma_semaphore, #tpu.memory_space<semaphore_mem>>) attributes {dimension_semantics = [#tpu.dimension_semantics<parallel>], iteration_bounds = array<i64: 2>, scalar_prefetch = 1 : i64, scratch_operands = 2 : i64, tpu.core_type = #tpu.core_type<tc>, window_params = [{transform_indices = @transform_0, window_bounds = array<i64: 8, 1>}, {}, {transform_indices = @transform_2, window_bounds = array<i64: 8, 128>}, {transform_indices = @transform_3, window_bounds = array<i64: 8, 1>}]} {
    %c8_i32 = arith.constant 8 : i32
    %0 = arith.muli %arg0, %c8_i32 : i32
    %c0_i32 = arith.constant 0 : i32
    %1 = arith.addi %0, %c0_i32 : i32
    %2 = arith.index_cast %1 : i32 to index
    %3 = memref.load %arg1[%2] : memref<16xi32, #tpu.memory_space<smem>>
    %c0_i32_0 = arith.constant 0 : i32
    %4 = arith.maxsi %3, %c0_i32_0 : i32
    %c127_i32 = arith.constant 127 : i32
    %5 = arith.minsi %4, %c127_i32 : i32
    %c0_i32_1 = arith.constant 0 : i32
    %6 = tpu.memref_slice %arg3[%5, %c0_i32_1] : memref<128x128xf32, #tpu.memory_space<any>> -> memref<1x128xf32, #tpu.memory_space<any>>
    %c0_i32_2 = arith.constant 0 : i32
    %7 = tpu.memref_slice %arg6[%c0_i32, %c0_i32_2] : memref<8x128xf32, #tpu.memory_space<vmem>> -> memref<1x128xf32, #tpu.memory_space<vmem>>
    tpu.enqueue_dma source(%6 : memref<1x128xf32, #tpu.memory_space<any>>) target(%7 : memref<1x128xf32, #tpu.memory_space<vmem>>) target_semaphore(%arg7 : memref<!tpu.dma_semaphore, #tpu.memory_space<semaphore_mem>>)
    %c1_i32 = arith.constant 1 : i32
    %8 = arith.addi %0, %c1_i32 : i32
    %9 = arith.index_cast %8 : i32 to index
    %10 = memref.load %arg1[%9] : memref<16xi32, #tpu.memory_space<smem>>
    %c0_i32_3 = arith.constant 0 : i32
    %11 = arith.maxsi %10, %c0_i32_3 : i32
    %c127_i32_4 = arith.constant 127 : i32
    %12 = arith.minsi %11, %c127_i32_4 : i32
    %c0_i32_5 = arith.constant 0 : i32
    %13 = tpu.memref_slice %arg3[%12, %c0_i32_5] : memref<128x128xf32, #tpu.memory_space<any>> -> memref<1x128xf32, #tpu.memory_space<any>>
    %c0_i32_6 = arith.constant 0 : i32
    %14 = tpu.memref_slice %arg6[%c1_i32, %c0_i32_6] : memref<8x128xf32, #tpu.memory_space<vmem>> -> memref<1x128xf32, #tpu.memory_space<vmem>>
    tpu.enqueue_dma source(%13 : memref<1x128xf32, #tpu.memory_space<any>>) target(%14 : memref<1x128xf32, #tpu.memory_space<vmem>>) target_semaphore(%arg7 : memref<!tpu.dma_semaphore, #tpu.memory_space<semaphore_mem>>)
    %c2_i32 = arith.constant 2 : i32
    %15 = arith.addi %0, %c2_i32 : i32
    %16 = arith.index_cast %15 : i32 to index
    %17 = memref.load %arg1[%16] : memref<16xi32, #tpu.memory_space<smem>>
    %c0_i32_7 = arith.constant 0 : i32
    %18 = arith.maxsi %17, %c0_i32_7 : i32
    %c127_i32_8 = arith.constant 127 : i32
    %19 = arith.minsi %18, %c127_i32_8 : i32
    %c0_i32_9 = arith.constant 0 : i32
    %20 = tpu.memref_slice %arg3[%19, %c0_i32_9] : memref<128x128xf32, #tpu.memory_space<any>> -> memref<1x128xf32, #tpu.memory_space<any>>
    %c0_i32_10 = arith.constant 0 : i32
    %21 = tpu.memref_slice %arg6[%c2_i32, %c0_i32_10] : memref<8x128xf32, #tpu.memory_space<vmem>> -> memref<1x128xf32, #tpu.memory_space<vmem>>
    tpu.enqueue_dma source(%20 : memref<1x128xf32, #tpu.memory_space<any>>) target(%21 : memref<1x128xf32, #tpu.memory_space<vmem>>) target_semaphore(%arg7 : memref<!tpu.dma_semaphore, #tpu.memory_space<semaphore_mem>>)
    %c3_i32 = arith.constant 3 : i32
    %22 = arith.addi %0, %c3_i32 : i32
    %23 = arith.index_cast %22 : i32 to index
    %24 = memref.load %arg1[%23] : memref<16xi32, #tpu.memory_space<smem>>
    %c0_i32_11 = arith.constant 0 : i32
    %25 = arith.maxsi %24, %c0_i32_11 : i32
    %c127_i32_12 = arith.constant 127 : i32
    %26 = arith.minsi %25, %c127_i32_12 : i32
    %c0_i32_13 = arith.constant 0 : i32
    %27 = tpu.memref_slice %arg3[%26, %c0_i32_13] : memref<128x128xf32, #tpu.memory_space<any>> -> memref<1x128xf32, #tpu.memory_space<any>>
    %c0_i32_14 = arith.constant 0 : i32
    %28 = tpu.memref_slice %arg6[%c3_i32, %c0_i32_14] : memref<8x128xf32, #tpu.memory_space<vmem>> -> memref<1x128xf32, #tpu.memory_space<vmem>>
    tpu.enqueue_dma source(%27 : memref<1x128xf32, #tpu.memory_space<any>>) target(%28 : memref<1x128xf32, #tpu.memory_space<vmem>>) target_semaphore(%arg7 : memref<!tpu.dma_semaphore, #tpu.memory_space<semaphore_mem>>)
    %c4_i32 = arith.constant 4 : i32
    %29 = arith.addi %0, %c4_i32 : i32
    %30 = arith.index_cast %29 : i32 to index
    %31 = memref.load %arg1[%30] : memref<16xi32, #tpu.memory_space<smem>>
    %c0_i32_15 = arith.constant 0 : i32
    %32 = arith.maxsi %31, %c0_i32_15 : i32
    %c127_i32_16 = arith.constant 127 : i32
    %33 = arith.minsi %32, %c127_i32_16 : i32
    %c0_i32_17 = arith.constant 0 : i32
    %34 = tpu.memref_slice %arg3[%33, %c0_i32_17] : memref<128x128xf32, #tpu.memory_space<any>> -> memref<1x128xf32, #tpu.memory_space<any>>
    %c0_i32_18 = arith.constant 0 : i32
    %35 = tpu.memref_slice %arg6[%c4_i32, %c0_i32_18] : memref<8x128xf32, #tpu.memory_space<vmem>> -> memref<1x128xf32, #tpu.memory_space<vmem>>
    tpu.enqueue_dma source(%34 : memref<1x128xf32, #tpu.memory_space<any>>) target(%35 : memref<1x128xf32, #tpu.memory_space<vmem>>) target_semaphore(%arg7 : memref<!tpu.dma_semaphore, #tpu.memory_space<semaphore_mem>>)
    %c5_i32 = arith.constant 5 : i32
    %36 = arith.addi %0, %c5_i32 : i32
    %37 = arith.index_cast %36 : i32 to index
    %38 = memref.load %arg1[%37] : memref<16xi32, #tpu.memory_space<smem>>
    %c0_i32_19 = arith.constant 0 : i32
    %39 = arith.maxsi %38, %c0_i32_19 : i32
    %c127_i32_20 = arith.constant 127 : i32
    %40 = arith.minsi %39, %c127_i32_20 : i32
    %c0_i32_21 = arith.constant 0 : i32
    %41 = tpu.memref_slice %arg3[%40, %c0_i32_21] : memref<128x128xf32, #tpu.memory_space<any>> -> memref<1x128xf32, #tpu.memory_space<any>>
    %c0_i32_22 = arith.constant 0 : i32
    %42 = tpu.memref_slice %arg6[%c5_i32, %c0_i32_22] : memref<8x128xf32, #tpu.memory_space<vmem>> -> memref<1x128xf32, #tpu.memory_space<vmem>>
    tpu.enqueue_dma source(%41 : memref<1x128xf32, #tpu.memory_space<any>>) target(%42 : memref<1x128xf32, #tpu.memory_space<vmem>>) target_semaphore(%arg7 : memref<!tpu.dma_semaphore, #tpu.memory_space<semaphore_mem>>)
    %c6_i32 = arith.constant 6 : i32
    %43 = arith.addi %0, %c6_i32 : i32
    %44 = arith.index_cast %43 : i32 to index
    %45 = memref.load %arg1[%44] : memref<16xi32, #tpu.memory_space<smem>>
    %c0_i32_23 = arith.constant 0 : i32
    %46 = arith.maxsi %45, %c0_i32_23 : i32
    %c127_i32_24 = arith.constant 127 : i32
    %47 = arith.minsi %46, %c127_i32_24 : i32
    %c0_i32_25 = arith.constant 0 : i32
    %48 = tpu.memref_slice %arg3[%47, %c0_i32_25] : memref<128x128xf32, #tpu.memory_space<any>> -> memref<1x128xf32, #tpu.memory_space<any>>
    %c0_i32_26 = arith.constant 0 : i32
    %49 = tpu.memref_slice %arg6[%c6_i32, %c0_i32_26] : memref<8x128xf32, #tpu.memory_space<vmem>> -> memref<1x128xf32, #tpu.memory_space<vmem>>
    tpu.enqueue_dma source(%48 : memref<1x128xf32, #tpu.memory_space<any>>) target(%49 : memref<1x128xf32, #tpu.memory_space<vmem>>) target_semaphore(%arg7 : memref<!tpu.dma_semaphore, #tpu.memory_space<semaphore_mem>>)
    %c7_i32 = arith.constant 7 : i32
    %50 = arith.addi %0, %c7_i32 : i32
    %51 = arith.index_cast %50 : i32 to index
    %52 = memref.load %arg1[%51] : memref<16xi32, #tpu.memory_space<smem>>
    %c0_i32_27 = arith.constant 0 : i32
    %53 = arith.maxsi %52, %c0_i32_27 : i32
    %c127_i32_28 = arith.constant 127 : i32
    %54 = arith.minsi %53, %c127_i32_28 : i32
    %c0_i32_29 = arith.constant 0 : i32
    %55 = tpu.memref_slice %arg3[%54, %c0_i32_29] : memref<128x128xf32, #tpu.memory_space<any>> -> memref<1x128xf32, #tpu.memory_space<any>>
    %c0_i32_30 = arith.constant 0 : i32
    %56 = tpu.memref_slice %arg6[%c7_i32, %c0_i32_30] : memref<8x128xf32, #tpu.memory_space<vmem>> -> memref<1x128xf32, #tpu.memory_space<vmem>>
    tpu.enqueue_dma source(%55 : memref<1x128xf32, #tpu.memory_space<any>>) target(%56 : memref<1x128xf32, #tpu.memory_space<vmem>>) target_semaphore(%arg7 : memref<!tpu.dma_semaphore, #tpu.memory_space<semaphore_mem>>)
    %c8_i32_31 = arith.constant 8 : i32
    %c0_i32_32 = arith.constant 0 : i32
    %c0_i32_33 = arith.constant 0 : i32
    %c0_i32_34 = arith.constant 0 : i32
    %57 = tpu.memref_slice %arg3[%c0_i32_33, %c0_i32_34] : memref<128x128xf32, #tpu.memory_space<any>> -> memref<1x128xf32, #tpu.memory_space<any>>
    %c0_i32_35 = arith.constant 0 : i32
    %58 = tpu.memref_slice %arg6[%c0_i32_32, %c0_i32_35] : memref<8x128xf32, #tpu.memory_space<vmem>> -> memref<1x128xf32, #tpu.memory_space<vmem>>
    tpu.wait_dma2 semaphore(%arg7 : memref<!tpu.dma_semaphore, #tpu.memory_space<semaphore_mem>>) src(%57 : memref<1x128xf32, #tpu.memory_space<any>>) dst(%58 : memref<1x128xf32, #tpu.memory_space<vmem>>)
    %c1_i32_36 = arith.constant 1 : i32
    %c0_i32_37 = arith.constant 0 : i32
    %c0_i32_38 = arith.constant 0 : i32
    %59 = tpu.memref_slice %arg3[%c0_i32_37, %c0_i32_38] : memref<128x128xf32, #tpu.memory_space<any>> -> memref<1x128xf32, #tpu.memory_space<any>>
    %c0_i32_39 = arith.constant 0 : i32
    %60 = tpu.memref_slice %arg6[%c1_i32_36, %c0_i32_39] : memref<8x128xf32, #tpu.memory_space<vmem>> -> memref<1x128xf32, #tpu.memory_space<vmem>>
    tpu.wait_dma2 semaphore(%arg7 : memref<!tpu.dma_semaphore, #tpu.memory_space<semaphore_mem>>) src(%59 : memref<1x128xf32, #tpu.memory_space<any>>) dst(%60 : memref<1x128xf32, #tpu.memory_space<vmem>>)
    %c2_i32_40 = arith.constant 2 : i32
    %c0_i32_41 = arith.constant 0 : i32
    %c0_i32_42 = arith.constant 0 : i32
    %61 = tpu.memref_slice %arg3[%c0_i32_41, %c0_i32_42] : memref<128x128xf32, #tpu.memory_space<any>> -> memref<1x128xf32, #tpu.memory_space<any>>
    %c0_i32_43 = arith.constant 0 : i32
    %62 = tpu.memref_slice %arg6[%c2_i32_40, %c0_i32_43] : memref<8x128xf32, #tpu.memory_space<vmem>> -> memref<1x128xf32, #tpu.memory_space<vmem>>
    tpu.wait_dma2 semaphore(%arg7 : memref<!tpu.dma_semaphore, #tpu.memory_space<semaphore_mem>>) src(%61 : memref<1x128xf32, #tpu.memory_space<any>>) dst(%62 : memref<1x128xf32, #tpu.memory_space<vmem>>)
    %c3_i32_44 = arith.constant 3 : i32
    %c0_i32_45 = arith.constant 0 : i32
    %c0_i32_46 = arith.constant 0 : i32
    %63 = tpu.memref_slice %arg3[%c0_i32_45, %c0_i32_46] : memref<128x128xf32, #tpu.memory_space<any>> -> memref<1x128xf32, #tpu.memory_space<any>>
    %c0_i32_47 = arith.constant 0 : i32
    %64 = tpu.memref_slice %arg6[%c3_i32_44, %c0_i32_47] : memref<8x128xf32, #tpu.memory_space<vmem>> -> memref<1x128xf32, #tpu.memory_space<vmem>>
    tpu.wait_dma2 semaphore(%arg7 : memref<!tpu.dma_semaphore, #tpu.memory_space<semaphore_mem>>) src(%63 : memref<1x128xf32, #tpu.memory_space<any>>) dst(%64 : memref<1x128xf32, #tpu.memory_space<vmem>>)
    %c4_i32_48 = arith.constant 4 : i32
    %c0_i32_49 = arith.constant 0 : i32
    %c0_i32_50 = arith.constant 0 : i32
    %65 = tpu.memref_slice %arg3[%c0_i32_49, %c0_i32_50] : memref<128x128xf32, #tpu.memory_space<any>> -> memref<1x128xf32, #tpu.memory_space<any>>
    %c0_i32_51 = arith.constant 0 : i32
    %66 = tpu.memref_slice %arg6[%c4_i32_48, %c0_i32_51] : memref<8x128xf32, #tpu.memory_space<vmem>> -> memref<1x128xf32, #tpu.memory_space<vmem>>
    tpu.wait_dma2 semaphore(%arg7 : memref<!tpu.dma_semaphore, #tpu.memory_space<semaphore_mem>>) src(%65 : memref<1x128xf32, #tpu.memory_space<any>>) dst(%66 : memref<1x128xf32, #tpu.memory_space<vmem>>)
    %c5_i32_52 = arith.constant 5 : i32
    %c0_i32_53 = arith.constant 0 : i32
    %c0_i32_54 = arith.constant 0 : i32
    %67 = tpu.memref_slice %arg3[%c0_i32_53, %c0_i32_54] : memref<128x128xf32, #tpu.memory_space<any>> -> memref<1x128xf32, #tpu.memory_space<any>>
    %c0_i32_55 = arith.constant 0 : i32
    %68 = tpu.memref_slice %arg6[%c5_i32_52, %c0_i32_55] : memref<8x128xf32, #tpu.memory_space<vmem>> -> memref<1x128xf32, #tpu.memory_space<vmem>>
    tpu.wait_dma2 semaphore(%arg7 : memref<!tpu.dma_semaphore, #tpu.memory_space<semaphore_mem>>) src(%67 : memref<1x128xf32, #tpu.memory_space<any>>) dst(%68 : memref<1x128xf32, #tpu.memory_space<vmem>>)
    %c6_i32_56 = arith.constant 6 : i32
    %c0_i32_57 = arith.constant 0 : i32
    %c0_i32_58 = arith.constant 0 : i32
    %69 = tpu.memref_slice %arg3[%c0_i32_57, %c0_i32_58] : memref<128x128xf32, #tpu.memory_space<any>> -> memref<1x128xf32, #tpu.memory_space<any>>
    %c0_i32_59 = arith.constant 0 : i32
    %70 = tpu.memref_slice %arg6[%c6_i32_56, %c0_i32_59] : memref<8x128xf32, #tpu.memory_space<vmem>> -> memref<1x128xf32, #tpu.memory_space<vmem>>
    tpu.wait_dma2 semaphore(%arg7 : memref<!tpu.dma_semaphore, #tpu.memory_space<semaphore_mem>>) src(%69 : memref<1x128xf32, #tpu.memory_space<any>>) dst(%70 : memref<1x128xf32, #tpu.memory_space<vmem>>)
    %c7_i32_60 = arith.constant 7 : i32
    %c0_i32_61 = arith.constant 0 : i32
    %c0_i32_62 = arith.constant 0 : i32
    %71 = tpu.memref_slice %arg3[%c0_i32_61, %c0_i32_62] : memref<128x128xf32, #tpu.memory_space<any>> -> memref<1x128xf32, #tpu.memory_space<any>>
    %c0_i32_63 = arith.constant 0 : i32
    %72 = tpu.memref_slice %arg6[%c7_i32_60, %c0_i32_63] : memref<8x128xf32, #tpu.memory_space<vmem>> -> memref<1x128xf32, #tpu.memory_space<vmem>>
    tpu.wait_dma2 semaphore(%arg7 : memref<!tpu.dma_semaphore, #tpu.memory_space<semaphore_mem>>) src(%71 : memref<1x128xf32, #tpu.memory_space<any>>) dst(%72 : memref<1x128xf32, #tpu.memory_space<vmem>>)
    %c8_i32_64 = arith.constant 8 : i32
    %c0 = arith.constant 0 : index
    %c0_65 = arith.constant 0 : index
    %73 = vector.load %arg6[%c0, %c0_65] : memref<8x128xf32, #tpu.memory_space<vmem>>, vector<8x128xf32>
    %c0_66 = arith.constant 0 : index
    %c0_67 = arith.constant 0 : index
    %74 = vector.load %arg4[%c0_66, %c0_67] : memref<8x128xf32, #tpu.memory_space<vmem>>, vector<8x128xf32>
    tpu.vector_store %arg4[%c0_66, %c0_67], %73 {strides = array<i32>} : memref<8x128xf32, #tpu.memory_space<vmem>>, vector<8x128xf32>,
    %75 = tpu.iota {dimensions = array<i32: 1>} : vector<8x128xi32>
    %cst = arith.constant dense<0xFF800000> : vector<8xf32>
    %76 = vector.multi_reduction <maximumf>, %73, %cst [1] : vector<8x128xf32> to vector<8xf32>
    %77 = vector.shape_cast %76 : vector<8xf32> to vector<8x1xf32>
    %78 = vector.broadcast %77 : vector<8x1xf32> to vector<8x128xf32>
    %79 = arith.subf %73, %78 : vector<8x128xf32>
    %80 = math.exp %79 : vector<8x128xf32>
    %cst_68 = arith.constant dense<0.000000e+00> : vector<8xf32>
    %81 = vector.multi_reduction <add>, %80, %cst_68 [1] : vector<8x128xf32> to vector<8xf32>
    %82 = vector.shape_cast %81 : vector<8xf32> to vector<8x1xf32>
    %83 = math.log %82 : vector<8x1xf32>
    %84 = arith.addf %77, %83 : vector<8x1xf32>
    %c0_69 = arith.constant 0 : index
    %c0_70 = arith.constant 0 : index
    %85 = vector.load %arg2[%c0_69, %c0_70] : memref<8x1xi32, #tpu.memory_space<vmem>>, vector<8x1xi32>
    %86 = vector.broadcast %85 : vector<8x1xi32> to vector<8x128xi32>
    %87 = arith.cmpi eq, %75, %86 : vector<8x128xi32>
    %cst_71 = arith.constant 0.000000e+00 : f32
    %88 = vector.broadcast %cst_71 : f32 to vector<8x128xf32>
    %89 = arith.select %87, %73, %88 : vector<8x128xi1>, vector<8x128xf32>
    %cst_72 = arith.constant dense<0.000000e+00> : vector<8xf32>
    %90 = vector.multi_reduction <add>, %89, %cst_72 [1] : vector<8x128xf32> to vector<8xf32>
    %91 = vector.shape_cast %90 : vector<8xf32> to vector<8x1xf32>
    %c0_73 = arith.constant 0 : index
    %c0_74 = arith.constant 0 : index
    %92 = vector.load %arg2[%c0_73, %c0_74] : memref<8x1xi32, #tpu.memory_space<vmem>>, vector<8x1xi32>
    %c0_i32_75 = arith.constant 0 : i32
    %93 = vector.broadcast %c0_i32_75 : i32 to vector<8x1xi32>
    %94 = arith.cmpi sge, %92, %93 : vector<8x1xi32>
    %95 = arith.extui %94 : vector<8x1xi1> to vector<8x1xi32>
    %96 = arith.sitofp %95 : vector<8x1xi32> to vector<8x1xf32>
    %97 = arith.subf %84, %91 : vector<8x1xf32>
    %98 = arith.mulf %97, %96 : vector<8x1xf32>
    %c0_76 = arith.constant 0 : index
    %c0_77 = arith.constant 0 : index
    %99 = vector.load %arg5[%c0_76, %c0_77] : memref<8x1xf32, #tpu.memory_space<vmem>>, vector<8x1xf32>
    tpu.vector_store %arg5[%c0_76, %c0_77], %98 {strides = array<i32>} : memref<8x1xf32, #tpu.memory_space<vmem>>, vector<8x1xf32>,
    return
  }
  func.func @transform_0(%arg0: i32, %arg1: memref<16xi32, #tpu.memory_space<smem>>) -> (i32, i32) {
    %c0_i32 = arith.constant 0 : i32
    %c0_i32_0 = arith.constant 0 : i32
    return %arg0, %c0_i32 : i32, i32
  }
  func.func @transform_2(%arg0: i32, %arg1: memref<16xi32, #tpu.memory_space<smem>>) -> (i32, i32) {
    %c0_i32 = arith.constant 0 : i32
    %c0_i32_0 = arith.constant 0 : i32
    return %arg0, %c0_i32 : i32, i32
  }
  func.func @transform_3(%arg0: i32, %arg1: memref<16xi32, #tpu.memory_space<smem>>) -> (i32, i32) {
    %c0_i32 = arith.constant 0 : i32
    %c0_i32_0 = arith.constant 0 : i32
    return %arg0, %c0_i32 : i32, i32
  }
}

</mosaic_0001>

<llo_original>
// kernel: tpu_custom_call.1
$region0: #{tpu_custom_call.1}
  #allocation0 [shape = 'u32[]', space=smem, size = 0x4, offset = 0x4, fixed_abs, tag = 'smem constant byte address 0x4 - core index']
  #allocation1 [shape = 'u32[144,128]{1,0:T(1,128)}', space=vmem, size = 0x12000, scoped, tag = 'internal scratch']
  #allocation2 [shape = 'f32[8,128]{1,0:T(8,128)}', space=vmem, size = 0x1000, scoped, tag = 'scratch operand']
  #allocation3 [shape = 's32[1]{0}', space=sflag, size = 0x4, scoped, tag = 'scratch operand']
  #allocation4 [shape = 's32[1]{0}', space=sflag, size = 0x4, scoped, tag = 'scoped memory for tpu_custom_call.1']
  #allocation5 [shape = 'u8[512]{0}', space=smem, size = 0x200, scoped, tag = 'prefetched SMEM operand 0']
  #allocation8 [shape = 's32[]', space=sflag, size = 0x4, offset = 0, fixed_abs, tag = 'sflag constant byte address 0x0 - dummy sync flag']
  #allocation9 [shape = 's32[]', space=sflag, size = 0x4, offset = 0, fixed_abs, tag = 'sflag constant byte address 0x0 - dummy sync flag']
  #allocation10 [shape = 'u32[]', space=smem, size = 0x4, offset = 0x44, fixed_abs, tag = 'smem constant byte address 0x44 - assertion arg 0']
  #allocation11 [shape = 'u32[]', space=smem, size = 0x4, offset = 0x48, fixed_abs, tag = 'smem constant byte address 0x48 - assertion arg 1']
  #allocation12 [shape = 's32[]', space=sflag, size = 0x4, offset = 0, fixed_abs, tag = 'sflag constant byte address 0x0 - dummy sync flag']
  #allocation13 [shape = 's32[]', space=sflag, size = 0x4, offset = 0, fixed_abs, tag = 'sflag constant byte address 0x0 - dummy sync flag']
  #allocation14 [shape = 's32[]', space=sflag, size = 0x4, offset = 0, fixed_abs, tag = 'sflag constant byte address 0x0 - dummy sync flag']
  #allocation15 [shape = 's32[]', space=sflag, size = 0x4, offset = 0, fixed_abs, tag = 'sflag constant byte address 0x0 - dummy sync flag']
  #allocation16 [shape = 's32[]', space=sflag, size = 0x4, offset = 0, fixed_abs, tag = 'sflag constant byte address 0x0 - dummy sync flag']
  #allocation17 [shape = 's32[]', space=sflag, size = 0x4, offset = 0, fixed_abs, tag = 'sflag constant byte address 0x0 - dummy sync flag']
  #allocation18 [shape = 's32[]', space=sflag, size = 0x4, offset = 0, fixed_abs, tag = 'sflag constant byte address 0x0 - dummy sync flag']
  #allocation19 [shape = 's32[]', space=sflag, size = 0x4, offset = 0, fixed_abs, tag = 'sflag constant byte address 0x0 - dummy sync flag']
  #allocation20 [shape = 's32[]', space=sflag, size = 0x4, offset = 0, fixed_abs, tag = 'sflag constant byte address 0x0 - dummy sync flag']
  #allocation21 [shape = 's32[]', space=sflag, size = 0x4, offset = 0, fixed_abs, tag = 'sflag constant byte address 0x0 - dummy sync flag']
  #allocation22 [shape = 's32[]', space=sflag, size = 0x4, offset = 0, fixed_abs, tag = 'sflag constant byte address 0x0 - dummy sync flag']
  #allocation23 [shape = 's32[]', space=sflag, size = 0x4, offset = 0, fixed_abs, tag = 'sflag constant byte address 0x0 - dummy sync flag']
  #allocation24 [shape = 's32[]', space=sflag, size = 0x4, offset = 0, fixed_abs, tag = 'sflag constant byte address 0x0 - dummy sync flag']
  #allocation25 [shape = 's32[]', space=sflag, size = 0x4, offset = 0, fixed_abs, tag = 'sflag constant byte address 0x0 - dummy sync flag']
  %s0 = inlined_call_operand.vmem [shape: s32[16], index: 0, kind: input, shape index: {}]
  %s1 = inlined_call_operand.vmem [shape: s32[16,1], index: 1, kind: input, shape index: {}]
  %s2 = inlined_call_operand.hbm [shape: f32[128,128], index: 2, kind: input, shape index: {}]
  %s3 = inlined_call_operand.hbm [shape: f32[16,128], index: 3, kind: output, shape index: {0}]
  %s4 = inlined_call_operand.vmem [shape: f32[16,1], index: 4, kind: output, shape index: {1}]
  %5 = xla_tuple %s3, %s4
  %s6 = sld [smem:[#allocation0]]
  $region77: #{tpu_custom_call.1} parent=0
    _
  %s8 = ssub.s32 1, %s6
  %s9 = scalar_select 0, %s8, %s6
  %s10 = sshll.u32 %s0, 4
  %s11 = int_to_ptr.vmem [resolvable:$true] %s10
  %13 = dma.vmem_to_smem %s11, 16, [#allocation5], [#allocation4]
  %14 = dma.done [#allocation4], 16
  %15 = sfence
  $region1: #{tpu_custom_call.1} parent=0
    #allocation6 [shape = 'u8[8192]{0}', space=vmem, size = 0x2000, scoped, tag = 'output window, operand 0']
    #allocation7 [shape = 's32[2]{0}', space=sflag, size = 0x8, scoped, tag = 'scoped memory for tpu_custom_call.1']
    %16 = vsyncpa [#allocation7], 0
    %s17 = scalar_lea.sflag [#allocation7], 1
    %18 = vsyncpa %s17, 0
    loop: start=0, step=1, limit=4
    $region2: #{tpu_custom_call.1} parent=1 // loop_pre_header
      _
    $region3: #{tpu_custom_call.1} parent=1 // loop_header
      %s20 = sphi 0, %s24
      %p21 = scmp.ge.s32.totalorder %s20, 4
      %s30 = sphi 0, %s32
      %s33 = sphi 0, %s30
      %s34 = sphi 0, %s33
      %s50 = sphi 0, %s34
      %s56 = sphi 0, %s58
      %s59 = sphi 0, %s56
      %s60 = sphi 0, %s59
      %s76 = sphi 0, %s60
      %s82 = sphi 0, %s84
      %s85 = sphi 0, %s82
      %s86 = sphi 0, %s85
      %s102 = sphi 0, %s86
    $region4: #{tpu_custom_call.1} parent=1 // loop_header_branch
      %23 = sbr.rel (%p21) target = $region8
    $region5: #{tpu_custom_call.1} parent=1 // loop_body
      %s25 = ssub.s32 %s20, 1
      %s26 = ssub.s32 %s20, 2
      %s27 = sadd.s32 %s20, 1
      %s28 = ssub.s32 %s20, %s27
      %p29 = scmp.eq.s32.totalorder %s28, 0
      %s31 = sadd.s32 %s30, 1
      %s32 = scalar_select %p29, %s30, %s31
      %p35 = pneg %p29
      %p36 = scmp.eq.s32.totalorder %s20, 1
      %p37 = por %p35, %p36
      %p38 = scmp.ne.s32.totalorder %s30, %s33
      %p39 = scmp.eq.s32.totalorder %s20, 0
      %p40 = por %p38, %p39
      %p41 = scmp.ne.s32.totalorder %s30, %s33
      %p42 = scmp.eq.s32.totalorder %s25, 1
      %p43 = por %p41, %p42
      %p44 = scmp.ne.s32.totalorder %s33, %s34
      %p45 = scmp.eq.s32.totalorder %s25, 0
      %p46 = por %p44, %p45
      %p47 = scmp.ne.s32.totalorder %s33, %s34
      %p48 = scmp.eq.s32.totalorder %s26, 1
      %p49 = por %p47, %p48
      %p51 = scmp.ne.s32.totalorder %s34, %s50
      %p52 = scmp.eq.s32.totalorder %s26, 0
      %p53 = por %p51, %p52
      %s54 = ssub.s32 %s20, %s27
      %p55 = scmp.eq.s32.totalorder %s54, 0
      %s57 = sadd.s32 %s56, 1
      %s58 = scalar_select %p55, %s56, %s57
      %p61 = pneg %p55
      %p62 = scmp.eq.s32.totalorder %s20, 1
      %p63 = por %p61, %p62
      %p64 = scmp.ne.s32.totalorder %s56, %s59
      %p65 = scmp.eq.s32.totalorder %s20, 0
      %p66 = por %p64, %p65
      %p67 = scmp.ne.s32.totalorder %s56, %s59
      %p68 = scmp.eq.s32.totalorder %s25, 1
      %p69 = por %p67, %p68
      %p70 = scmp.ne.s32.totalorder %s59, %s60
      %p71 = scmp.eq.s32.totalorder %s25, 0
      %p72 = por %p70, %p71
      %p73 = scmp.ne.s32.totalorder %s59, %s60
      %p74 = scmp.eq.s32.totalorder %s26, 1
      %p75 = por %p73, %p74
      %p77 = scmp.ne.s32.totalorder %s60, %s76
      %p78 = scmp.eq.s32.totalorder %s26, 0
      %p79 = por %p77, %p78
      %s80 = ssub.s32 %s20, %s27
      %p81 = scmp.eq.s32.totalorder %s80, 0
      %s83 = sadd.s32 %s82, 1
      %s84 = scalar_select %p81, %s82, %s83
      %p87 = pneg %p81
      %p88 = scmp.eq.s32.totalorder %s20, 1
      %p89 = por %p87, %p88
      %p90 = scmp.ne.s32.totalorder %s82, %s85
      %p91 = scmp.eq.s32.totalorder %s20, 0
      %p92 = por %p90, %p91
      %p93 = scmp.ne.s32.totalorder %s82, %s85
      %p94 = scmp.eq.s32.totalorder %s25, 1
      %p95 = por %p93, %p94
      %p96 = scmp.ne.s32.totalorder %s85, %s86
      %p97 = scmp.eq.s32.totalorder %s25, 0
      %p98 = por %p96, %p97
      %p99 = scmp.ne.s32.totalorder %s85, %s86
      %p100 = scmp.eq.s32.totalorder %s26, 1
      %p101 = por %p99, %p100
      %p103 = scmp.ne.s32.totalorder %s86, %s102
      %p104 = scmp.eq.s32.totalorder %s26, 0
      %p105 = por %p103, %p104
      %p106 = scmp.le.s32.totalorder 1, %s20
      %p107 = scmp.lt.s32.totalorder %s20, 3
      %p108 = pnand %p106, %p107
      %p109 = pneg %p108
      // Predicated region
      $region9: #{tpu_custom_call.1} parent=5 // pred_check
        _
      $region10: #{tpu_custom_call.1} parent=5 // pred_check_branch
        %111 = sbr.rel (%p108) target = $region12
      $region11: #{tpu_custom_call.1} parent=5 // pred_region
        %s112 = ssub.s32 %s20, 1
      $region12: #{tpu_custom_call.1} parent=5 // pred_fallthru
        _
      %p113 = scmp.lt.s32.totalorder %s20, 2
      // Predicated region
      $region13: #{tpu_custom_call.1} parent=5 // pred_check
        %p114 = pneg %p113
      $region14: #{tpu_custom_call.1} parent=5 // pred_check_branch
        %116 = sbr.rel (%p114) target = $region16
      $region15: #{tpu_custom_call.1} parent=5 // pred_region
        // Predicated region
        $region17: #{tpu_custom_call.1} parent=15 // pred_check
          %p117 = pneg %p40
        $region18: #{tpu_custom_call.1} parent=15 // pred_check_branch
          %119 = sbr.rel (%p117) target = $region20
        $region19: #{tpu_custom_call.1} parent=15 // pred_region
          %p120 = scmp.lt.s32.totalorder %s20, 1
          %s121 = scalar_select %p120, %s20, 1
          %s122 = smul.addr %s121, 8
          %s123 = scalar_lea.vmem %s1, %s122
        $region20: #{tpu_custom_call.1} parent=15 // pred_fallthru
          _
      $region16: #{tpu_custom_call.1} parent=5 // pred_fallthru
        _
      %p124 = scmp.le.s32.totalorder 1, %s20
      %p125 = scmp.lt.s32.totalorder %s20, 3
      %p126 = pnand %p124, %p125
      %p127 = pneg %p126
      // Predicated region
      $region21: #{tpu_custom_call.1} parent=5 // pred_check
        _
      $region22: #{tpu_custom_call.1} parent=5 // pred_check_branch
        %129 = sbr.rel (%p126) target = $region24
      $region23: #{tpu_custom_call.1} parent=5 // pred_region
        %s130 = ssub.s32 %s20, 1
        %p131 = scmp.lt.s32.totalorder %s25, 1
        %s132 = scalar_select %p131, %s25, 1
        %s133 = smul.addr %s132, 8
        %s134 = scalar_lea.vmem %s1, %s133
        %p135 = pneg %p46
        %p136 = pneg %p43
        %p137 = pneg %p72
        %p138 = pneg %p69
        %s139 = sand.u32 %s59, 1
        %s140 = scalar_lea.sflag [#allocation7], %s139
        %s141 = sand.u32 %s59, 1
        %s142 = smul.addr %s141, 8
        %s143 = scalar_lea.vmem [#allocation6], %s142
        %p144 = pneg %p98
        %p145 = pneg %p95
        %p146 = scmp.lt.s32.totalorder %s25, 1
        %s147 = scalar_select %p146, %s25, 1
        %s148 = smul.addr %s147, 8
        %s149 = scalar_lea.vmem %s4, %s148
        %p150 = scmp.lt.s32.totalorder %s25, 1
        %s151 = scalar_select %p150, %s25, 1
        %s152 = smul.addr %s151, 8
        %s153 = scalar_lea.vmem %s1, %s152
        %p154 = scmp.lt.s32.totalorder %s25, 1
        %s155 = scalar_select %p154, %s25, 1
        %s156 = smul.addr %s155, 8
        %s157 = scalar_lea.vmem %s4, %s156
        %s158 = smul.u32 %s25, 8
        %s159 = sld [smem:[#allocation5 + %s158]]
        %p160 = scmp.gt.s32.totalorder %s159, 0
        %s161 = scalar_select %p160, %s159, 0
        %p162 = scmp.lt.s32.totalorder %s161, 127
        %s163 = scalar_select %p162, %s161, 127
        %s164 = smul.addr %s163, 16
        %s165 = scalar_lea.hbm %s2, %s164
        // Predicated region
        $region25: #{tpu_custom_call.1} parent=23 // pred_check
          _
        $region26: #{tpu_custom_call.1} parent=23 // pred_check_branch
          %167 = sbr.rel target = $region28
        $region27: #{tpu_custom_call.1} parent=23 // pred_region
          %168 = sst [smem:[#allocation10]] [#allocation9]
          %169 = sst [smem:[#allocation11]] [#allocation8]
        $region28: #{tpu_custom_call.1} parent=23 // pred_fallthru
          _
        %171 = shalt.err (0)
        %s173 = sshll.u32 [#allocation2], 4
        %s174 = int_to_ptr.vmem [resolvable:$true] %s173
        %176 = dma.hbm_to_vmem [thread:$0]  %s165, 16, %s174, [#allocation3]
        %s177 = sadd.s32 %s158, 1
        %s178 = sld [smem:[#allocation5 + %s177]]
        %p179 = scmp.gt.s32.totalorder %s178, 0
        %s180 = scalar_select %p179, %s178, 0
        %p181 = scmp.lt.s32.totalorder %s180, 127
        %s182 = scalar_select %p181, %s180, 127
        %s183 = smul.addr %s182, 16
        %s184 = scalar_lea.hbm %s2, %s183
        %s185 = scalar_lea.vmem [#allocation2], 1
        // Predicated region
        $region29: #{tpu_custom_call.1} parent=23 // pred_check
          _
        $region30: #{tpu_custom_call.1} parent=23 // pred_check_branch
          %187 = sbr.rel target = $region32
        $region31: #{tpu_custom_call.1} parent=23 // pred_region
          %188 = sst [smem:[#allocation10]] [#allocation13]
          %189 = sst [smem:[#allocation11]] [#allocation12]
        $region32: #{tpu_custom_call.1} parent=23 // pred_fallthru
          _
        %191 = shalt.err (0)
        %s193 = sshll.u32 %s185, 4
        %s194 = int_to_ptr.vmem [resolvable:$true] %s193
        %196 = dma.hbm_to_vmem [thread:$0]  %s184, 16, %s194, [#allocation3]
        %s197 = sadd.s32 %s158, 2
        %s198 = sld [smem:[#allocation5 + %s197]]
        %p199 = scmp.gt.s32.totalorder %s198, 0
        %s200 = scalar_select %p199, %s198, 0
        %p201 = scmp.lt.s32.totalorder %s200, 127
        %s202 = scalar_select %p201, %s200, 127
        %s203 = smul.addr %s202, 16
        %s204 = scalar_lea.hbm %s2, %s203
        %s205 = scalar_lea.vmem [#allocation2], 2
        // Predicated region
        $region33: #{tpu_custom_call.1} parent=23 // pred_check
          _
        $region34: #{tpu_custom_call.1} parent=23 // pred_check_branch
          %207 = sbr.rel target = $region36
        $region35: #{tpu_custom_call.1} parent=23 // pred_region
          %208 = sst [smem:[#allocation10]] [#allocation15]
          %209 = sst [smem:[#allocation11]] [#allocation14]
        $region36: #{tpu_custom_call.1} parent=23 // pred_fallthru
          _
        %211 = shalt.err (0)
        %s213 = sshll.u32 %s205, 4
        %s214 = int_to_ptr.vmem [resolvable:$true] %s213
        %216 = dma.hbm_to_vmem [thread:$0]  %s204, 16, %s214, [#allocation3]
        %s217 = sadd.s32 %s158, 3
        %s218 = sld [smem:[#allocation5 + %s217]]
        %p219 = scmp.gt.s32.totalorder %s218, 0
        %s220 = scalar_select %p219, %s218, 0
        %p221 = scmp.lt.s32.totalorder %s220, 127
        %s222 = scalar_select %p221, %s220, 127
        %s223 = smul.addr %s222, 16
        %s224 = scalar_lea.hbm %s2, %s223
        %s225 = scalar_lea.vmem [#allocation2], 3
        // Predicated region
        $region37: #{tpu_custom_call.1} parent=23 // pred_check
          _
        $region38: #{tpu_custom_call.1} parent=23 // pred_check_branch
          %227 = sbr.rel target = $region40
        $region39: #{tpu_custom_call.1} parent=23 // pred_region
          %228 = sst [smem:[#allocation10]] [#allocation17]
          %229 = sst [smem:[#allocation11]] [#allocation16]
        $region40: #{tpu_custom_call.1} parent=23 // pred_fallthru
          _
        %231 = shalt.err (0)
        %s233 = sshll.u32 %s225, 4
        %s234 = int_to_ptr.vmem [resolvable:$true] %s233
        %236 = dma.hbm_to_vmem [thread:$0]  %s224, 16, %s234, [#allocation3]
        %s237 = sadd.s32 %s158, 4
        %s238 = sld [smem:[#allocation5 + %s237]]
        %p239 = scmp.gt.s32.totalorder %s238, 0
        %s240 = scalar_select %p239, %s238, 0
        %p241 = scmp.lt.s32.totalorder %s240, 127
        %s242 = scalar_select %p241, %s240, 127
        %s243 = smul.addr %s242, 16
        %s244 = scalar_lea.hbm %s2, %s243
        %s245 = scalar_lea.vmem [#allocation2], 4
        // Predicated region
        $region41: #{tpu_custom_call.1} parent=23 // pred_check
          _
        $region42: #{tpu_custom_call.1} parent=23 // pred_check_branch
          %247 = sbr.rel target = $region44
        $region43: #{tpu_custom_call.1} parent=23 // pred_region
          %248 = sst [smem:[#allocation10]] [#allocation19]
          %249 = sst [smem:[#allocation11]] [#allocation18]
        $region44: #{tpu_custom_call.1} parent=23 // pred_fallthru
          _
        %251 = shalt.err (0)
        %s253 = sshll.u32 %s245, 4
        %s254 = int_to_ptr.vmem [resolvable:$true] %s253
        %256 = dma.hbm_to_vmem [thread:$0]  %s244, 16, %s254, [#allocation3]
        %s257 = sadd.s32 %s158, 5
        %s258 = sld [smem:[#allocation5 + %s257]]
        %p259 = scmp.gt.s32.totalorder %s258, 0
        %s260 = scalar_select %p259, %s258, 0
        %p261 = scmp.lt.s32.totalorder %s260, 127
        %s262 = scalar_select %p261, %s260, 127
        %s263 = smul.addr %s262, 16
        %s264 = scalar_lea.hbm %s2, %s263
        %s265 = scalar_lea.vmem [#allocation2], 5
        // Predicated region
        $region45: #{tpu_custom_call.1} parent=23 // pred_check
          _
        $region46: #{tpu_custom_call.1} parent=23 // pred_check_branch
          %267 = sbr.rel target = $region48
        $region47: #{tpu_custom_call.1} parent=23 // pred_region
          %268 = sst [smem:[#allocation10]] [#allocation21]
          %269 = sst [smem:[#allocation11]] [#allocation20]
        $region48: #{tpu_custom_call.1} parent=23 // pred_fallthru
          _
        %271 = shalt.err (0)
        %s273 = sshll.u32 %s265, 4
        %s274 = int_to_ptr.vmem [resolvable:$true] %s273
        %276 = dma.hbm_to_vmem [thread:$0]  %s264, 16, %s274, [#allocation3]
        %s277 = sadd.s32 %s158, 6
        %s278 = sld [smem:[#allocation5 + %s277]]
        %p279 = scmp.gt.s32.totalorder %s278, 0
        %s280 = scalar_select %p279, %s278, 0
        %p281 = scmp.lt.s32.totalorder %s280, 127
        %s282 = scalar_select %p281, %s280, 127
        %s283 = smul.addr %s282, 16
        %s284 = scalar_lea.hbm %s2, %s283
        %s285 = scalar_lea.vmem [#allocation2], 6
        // Predicated region
        $region49: #{tpu_custom_call.1} parent=23 // pred_check
          _
        $region50: #{tpu_custom_call.1} parent=23 // pred_check_branch
          %287 = sbr.rel target = $region52
        $region51: #{tpu_custom_call.1} parent=23 // pred_region
          %288 = sst [smem:[#allocation10]] [#allocation23]
          %289 = sst [smem:[#allocation11]] [#allocation22]
        $region52: #{tpu_custom_call.1} parent=23 // pred_fallthru
          _
        %291 = shalt.err (0)
        %s293 = sshll.u32 %s285, 4
        %s294 = int_to_ptr.vmem [resolvable:$true] %s293
        %296 = dma.hbm_to_vmem [thread:$0]  %s284, 16, %s294, [#allocation3]
        %s297 = sadd.s32 %s158, 7
        %s298 = sld [smem:[#allocation5 + %s297]]
        %p299 = scmp.gt.s32.totalorder %s298, 0
        %s300 = scalar_select %p299, %s298, 0
        %p301 = scmp.lt.s32.totalorder %s300, 127
        %s302 = scalar_select %p301, %s300, 127
        %s303 = smul.addr %s302, 16
        %s304 = scalar_lea.hbm %s2, %s303
        %s305 = scalar_lea.vmem [#allocation2], 7
        // Predicated region
        $region53: #{tpu_custom_call.1} parent=23 // pred_check
          _
        $region54: #{tpu_custom_call.1} parent=23 // pred_check_branch
          %307 = sbr.rel target = $region56
        $region55: #{tpu_custom_call.1} parent=23 // pred_region
          %308 = sst [smem:[#allocation10]] [#allocation25]
          %309 = sst [smem:[#allocation11]] [#allocation24]
        $region56: #{tpu_custom_call.1} parent=23 // pred_fallthru
          _
        %311 = shalt.err (0)
        %s313 = sshll.u32 %s305, 4
        %s314 = int_to_ptr.vmem [resolvable:$true] %s313
        %316 = dma.hbm_to_vmem [thread:$0]  %s304, 16, %s314, [#allocation3]
        %s317 = smul.u32 1, 1
        %s318 = sshll.u32 %s317, 4
        %319 = dma.done [#allocation3], %s318
        %s320 = sshll.u32 %s317, 4
        %321 = dma.done [#allocation3], %s320
        %s322 = sshll.u32 %s317, 4
        %323 = dma.done [#allocation3], %s322
        %s324 = sshll.u32 %s317, 4
        %325 = dma.done [#allocation3], %s324
        %s326 = sshll.u32 %s317, 4
        %327 = dma.done [#allocation3], %s326
        %s328 = sshll.u32 %s317, 4
        %329 = dma.done [#allocation3], %s328
        %s330 = sshll.u32 %s317, 4
        %331 = dma.done [#allocation3], %s330
        %s332 = sshll.u32 %s317, 4
        %333 = dma.done [#allocation3], %s332
        %v334 = vld [vmem:[#allocation2] sm:$0xff]
        %335 = vst [vmem:[%s143] sm:$0xff] %v334
        %v336 = vlaneseq
        %v337 = vand.u32 %v336, 127
        %338 = vmax.xlane.f32.xlu0 %v334
        %v339 = vpop.xlane.xlu0 %338
        %v340 = vsub.f32 %v334, %v339
        %v341 = vmul.f32 %v340, 1.442695
        %v342 = vpow.pop %v341
        %343 = vadd.xlane.f32.xlu0 %v342
        %v344 = vpop.xlane.xlu0 %343
        %v345 = vlog2.pop %v344
        %v346 = vmul.f32 %v345, 0.6931472
        %v347 = vadd.f32 %v339, %v346
        %v348 = vld [vmem:[%s153] sm:$0xff]
        %349 = vset.pattern.permute.xlu0 0
        %350 = vperm.xlu0 %349, %v348
        %v351 = vpop.permute.xlu0 %350
        %vm352 = vcmp.eq.s32.totalorder %v337, %v351
        %v353 = vsel %vm352, %v334, 0.0
        %354 = vadd.xlane.f32.xlu0 %v353
        %v355 = vpop.xlane.xlu0 %354
        %vm356 = vcmp.ge.s32.totalorder %v348, 0
        %v357 = vsel %vm356, 1, 0
        %v358 = vcvt.s32.f32 %v357
        %v359 = vsub.f32 %v347, %v355
        %v360 = vmul.f32 %v359, %v358
        %vm361 = vcmask 7168
        %362 = vst.msk [vmem:[%s157] sm:$0xff] %vm361, %v360
        %s363 = sand.u32 %s59, 1
        %s364 = scalar_lea.sflag [#allocation7], %s363
        %s365 = sand.u32 %s59, 1
        %s366 = smul.addr %s365, 8
        %s367 = scalar_lea.vmem [#allocation6], %s366
        %p368 = scmp.lt.s32.totalorder %s25, 1
        %s369 = scalar_select %p368, %s25, 1
        %s370 = smul.addr %s369, 8
        %s371 = scalar_lea.vmem %s4, %s370
        // Predicated region
        $region57: #{tpu_custom_call.1} parent=23 // pred_check
          %p372 = pneg %p69
        $region58: #{tpu_custom_call.1} parent=23 // pred_check_branch
          %374 = sbr.rel (%p372) target = $region60
        $region59: #{tpu_custom_call.1} parent=23 // pred_region
          %s376 = ssub.s32 128, 128
          %377 = vsyncadd %s364, %s376
          %s378 = smul.addr %s25, 128
          %s379 = scalar_lea.hbm %s3, %s378
          %s381 = sshll.u32 %s367, 4
          %s382 = int_to_ptr.vmem [resolvable:$true] %s381
          %384 = dma.vmem_to_hbm [thread:$0]  %s382, 128, %s379, %s364
        $region60: #{tpu_custom_call.1} parent=23 // pred_fallthru
          _
        // Predicated region
        $region61: #{tpu_custom_call.1} parent=23 // pred_check
          %p385 = pneg %p95
        $region62: #{tpu_custom_call.1} parent=23 // pred_check_branch
          %387 = sbr.rel (%p385) target = $region64
        $region63: #{tpu_custom_call.1} parent=23 // pred_region
          _
        $region64: #{tpu_custom_call.1} parent=23 // pred_fallthru
          _
      $region24: #{tpu_custom_call.1} parent=5 // pred_fallthru
        _
      %p388 = scmp.le.s32.totalorder 2, %s20
      // Predicated region
      $region65: #{tpu_custom_call.1} parent=5 // pred_check
        %p389 = pneg %p388
      $region66: #{tpu_custom_call.1} parent=5 // pred_check_branch
        %391 = sbr.rel (%p389) target = $region68
      $region67: #{tpu_custom_call.1} parent=5 // pred_region
        %s392 = ssub.s32 %s20, 2
        // Predicated region
        $region69: #{tpu_custom_call.1} parent=67 // pred_check
          %p393 = pneg %p75
        $region70: #{tpu_custom_call.1} parent=67 // pred_check_branch
          %395 = sbr.rel (%p393) target = $region72
        $region71: #{tpu_custom_call.1} parent=67 // pred_region
          %s396 = sand.u32 %s60, 1
          %s397 = scalar_lea.sflag [#allocation7], %s396
          %s398 = sand.u32 %s60, 1
          %s399 = smul.addr %s398, 8
          %s400 = scalar_lea.vmem [#allocation6], %s399
          %401 = dma.done %s397, 128
        $region72: #{tpu_custom_call.1} parent=67 // pred_fallthru
          _
        // Predicated region
        $region73: #{tpu_custom_call.1} parent=67 // pred_check
          %p402 = pneg %p101
        $region74: #{tpu_custom_call.1} parent=67 // pred_check_branch
          %404 = sbr.rel (%p402) target = $region76
        $region75: #{tpu_custom_call.1} parent=67 // pred_region
          %p405 = scmp.lt.s32.totalorder %s26, 1
          %s406 = scalar_select %p405, %s26, 1
          %s407 = smul.addr %s406, 8
          %s408 = scalar_lea.vmem %s4, %s407
        $region76: #{tpu_custom_call.1} parent=67 // pred_fallthru
          _
      $region68: #{tpu_custom_call.1} parent=5 // pred_fallthru
        _
    $region6: #{tpu_custom_call.1} parent=1 // loop_footer
      %s24 = sadd.s32 1, %s20
    $region7: #{tpu_custom_call.1} parent=1 // loop_footer_branch
      %19 = sbr.rel target = $region3
    $region8: #{tpu_custom_call.1} parent=1 // loop_exit
      _
    %409 = vsyncpa [#allocation7], 1
    %s410 = scalar_lea.sflag [#allocation7], 1
    %411 = vsyncpa %s410, 1
  %412 = vsyncmov [#allocation3]
  %s413 = vpop.sfrf %412
  %p414 = scmp.eq.s32.totalorder %s413, 0
  %p415 = pneg %p414
  %417 = shalt.err (%p415)

</llo_original>
